<compile_context>
chip_gen: v5e
topology: v5e:2x2
jax: 0.10.0
libtpu: 0.0.40
codegen_flags: <defaults>
</compile_context>

<pallas_src>
import functools

import jax
import jax.numpy as jnp
from jax.experimental import pallas as pl
from jax.experimental.pallas import tpu as pltpu


def _round_up(x: int, m: int) -> int:
    return (x + m - 1) // m * m


def mlp_kernel(x_ref, w1_ref, b1_ref, w2_ref, b2_ref, o_ref):
    # ---- Layer 1 on the MXU, full f32 (kernel is HBM-bound; MXU has slack) ----
    x = x_ref[...].astype(jnp.float32)                            # [TB, D]
    h = jax.lax.dot_general(
        x, w1_ref[...], (((1,), (0,)), ((), ())),
        preferred_element_type=jnp.float32,
        precision=jax.lax.Precision.HIGHEST)                       # [TB, H] f32
    h = jnp.maximum(h + b1_ref[...], 0.0)                          # bias + ReLU (VPU)

    # Dropout(p) in eval mode is the identity -> nothing to do here.
    # TODO(synk): training-mode stochastic dropout mask not implemented.

    # ---- Layer 2: (1,H) @ h^T -> (1,TB) lane-dense logits row on the MXU ----
    # (Same transposed-RHS contraction pattern as q @ k^T in flash attention;
    #  avoids a (TB,1) column result and its masked 1-lane stores.)
    logits = jax.lax.dot_general(
        w2_ref[...], h, (((1,), (1,)), ((), ())),
        preferred_element_type=jnp.float32,
        precision=jax.lax.Precision.HIGHEST)                       # [1, TB] f32
    logits = logits + b2_ref[0]                                    # scalar bias from SMEM
    o_ref[...] = jax.nn.sigmoid(logits)[None].astype(o_ref.dtype)  # [1, 1, TB]


@functools.partial(jax.jit, static_argnames=("tb",))
def simple_nn_forward(x, w1, b1, w2, b2, *, tb: int = 8192):
    """x: [B, D] (f32 or bf16); w1: [D, H]; b1: [H]; w2: [H]; b2: scalar -> [B, 1] f32."""
    B, D = x.shape
    H = w1.shape[1]

    tb = max(1024, _round_up(int(tb), 1024))

    if B >= 2048:
        # Big batch: multiple of 1024 rows per tile, clamped so there are always
        # >= 2 grid steps (both v7x TensorCores get work).  No padding of x:
        # the ragged last block is clamped by Pallas; garbage rows are sliced
        # off the output below.
        TB = min(tb, _round_up(pl.cdiv(B, 2), 1024))
    else:
        # Small batch: one block covering the full array (no alignment needed).
        TB = B
    num_tiles = pl.cdiv(B, TB)
    rows_out = num_tiles * TB

    # Operand prep (no dtype change of x here -- avoids an extra HBM round trip).
    w1_f = w1.astype(jnp.float32)                    # [D, H], VMEM-resident
    b1_row = b1.reshape(1, H).astype(jnp.float32)    # [1, H]
    w2_row = w2.reshape(1, H).astype(jnp.float32)    # [1, H] row
    b2_s = jnp.asarray(b2, jnp.float32).reshape(1)   # scalar -> SMEM

    # VMEM budget: double-buffered x/out tiles, resident weights, and the
    # in-kernel intermediates (f32 x copy, h, transposed-h operand, logits row).
    x_bytes = x.dtype.itemsize
    bytes_x_tiles = 2 * TB * D * x_bytes
    bytes_out_tiles = 2 * 8 * TB * 4              # (1,TB) block pads to 8 sublanes
    bytes_weights = 2 * (D * H * 4 + 2 * H * 4)
    bytes_interm = TB * D * 4 + 3 * TB * H * 4 + 16 * TB * 4
    vmem_bytes = bytes_x_tiles + bytes_out_tiles + bytes_weights + bytes_interm
    vmem_bytes = int(min(max(vmem_bytes + (2 << 20), 8 << 20), 32 << 20))

    cost = pl.CostEstimate(
        flops=int(2 * rows_out * D * H + 2 * rows_out * H),
        transcendentals=int(rows_out),                 # sigmoid
        bytes_accessed=int(x_bytes * B * D + 4 * D * H + 8 * H + 4 + 4 * rows_out),
    )

    out = pl.pallas_call(
        mlp_kernel,
        out_shape=jax.ShapeDtypeStruct((num_tiles, 1, TB), jnp.float32),
        grid=(num_tiles,),
        in_specs=[
            pl.BlockSpec((TB, D), lambda i: (i, 0)),             # x tile, pipelined
            pl.BlockSpec((D, H), lambda i: (0, 0)),              # w1, resident
            pl.BlockSpec((1, H), lambda i: (0, 0)),              # b1, resident
            pl.BlockSpec((1, H), lambda i: (0, 0)),              # w2 row, resident
            pl.BlockSpec(memory_space=pltpu.MemorySpace.SMEM),   # b2 scalar
        ],
        out_specs=pl.BlockSpec((1, 1, TB), lambda i: (i, 0, 0)),  # lane-dense row
        compiler_params=pltpu.CompilerParams(
            dimension_semantics=("parallel",),
            vmem_limit_bytes=vmem_bytes,
        ),
        cost_estimate=cost,
    )(x, w1_f, b1_row, w2_row, b2_s)

    # (num_tiles, 1, TB) -> flat rows -> drop ragged garbage -> [B, 1]
    return out.reshape(rows_out)[:B].reshape(B, 1)


def init_params(key, input_dim, hidden_dim=64):
    # Deterministic init mimicking PyTorch's default uniform(-1/sqrt(fan_in), +).
    k1, k2, k3, k4 = jax.random.split(key, 4)
    bound1 = 1.0 / jnp.sqrt(input_dim)
    bound2 = 1.0 / jnp.sqrt(hidden_dim)
    w1 = jax.random.uniform(k1, (input_dim, hidden_dim), jnp.float32, -bound1, bound1)
    b1 = jax.random.uniform(k2, (hidden_dim,), jnp.float32, -bound1, bound1)
    w2 = jax.random.uniform(k3, (hidden_dim,), jnp.float32, -bound2, bound2)
    b2 = jax.random.uniform(k4, (), jnp.float32, -bound2, bound2)
    return w1, b1, w2, b2


def _reference(x, w1, b1, w2, b2):
    # Plain-JAX f32 reference (inference-mode dropout = identity).
    h = jnp.maximum(jnp.dot(x, w1, precision=jax.lax.Precision.HIGHEST) + b1[None, :], 0.0)
    logits = jnp.dot(h, w2[:, None], precision=jax.lax.Precision.HIGHEST) + b2
    return jax.nn.sigmoid(logits)


if __name__ == "__main__":
    key = jax.random.PRNGKey(0)
    kp, kx1, kx2 = jax.random.split(key, 3)

    input_dim, hidden_dim = 32, 64
    w1, b1, w2, b2 = init_params(kp, input_dim, hidden_dim)

    # Small batch: single full-array block.
    batch1 = 8
    x1 = jax.random.normal(kx1, (batch1, input_dim), jnp.float32)
    out1 = jax.block_until_ready(simple_nn_forward(x1, w1, b1, w2, b2))
    ref1 = _reference(x1, w1, b1, w2, b2)
    assert out1.shape == (batch1, 1)
    assert jnp.allclose(out1, ref1, atol=5e-5, rtol=5e-5), float(jnp.max(jnp.abs(out1 - ref1)))

    # Multi-tile ragged batch (exercises the cdiv grid, "parallel" batch axis,
    # the clamped last block, and the lane-dense output path) with a small
    # forced tile so the test stays tiny.
    batch2 = 2500
    x2 = jax.random.normal(kx2, (batch2, input_dim), jnp.float32)
    out2 = jax.block_until_ready(simple_nn_forward(x2, w1, b1, w2, b2, tb=1024))
    ref2 = _reference(x2, w1, b1, w2, b2)
    assert out2.shape == (batch2, 1)
    assert jnp.allclose(out2, ref2, atol=5e-5, rtol=5e-5), float(jnp.max(jnp.abs(out2 - ref2)))

    print("KERNEL_OK")
</pallas_src>

<mosaic_0001>
module attributes {stable_mosaic.version = 11 : i64} {
  func.func @mlp_kernel(%arg0: i32, %arg1: memref<8x32xf32, #tpu.memory_space<vmem>>, %arg2: memref<32x64xf32, #tpu.memory_space<vmem>>, %arg3: memref<1x64xf32, #tpu.memory_space<vmem>>, %arg4: memref<1x64xf32, #tpu.memory_space<vmem>>, %arg5: memref<1xf32, #tpu.memory_space<smem>>, %arg6: memref<1x1x8xf32, #tpu.memory_space<vmem>>) attributes {dimension_semantics = [#tpu.dimension_semantics<parallel>], iteration_bounds = array<i64: 1>, scalar_prefetch = 0 : i64, scratch_operands = 0 : i64, tpu.core_type = #tpu.core_type<tc>, window_params = [{transform_indices = @transform_0, window_bounds = array<i64: 8, 32>}, {pipeline_mode = #tpu.pipeline_mode<synchronous>, transform_indices = @transform_1, window_bounds = array<i64: 32, 64>}, {pipeline_mode = #tpu.pipeline_mode<synchronous>, transform_indices = @transform_2, window_bounds = array<i64: 1, 64>}, {pipeline_mode = #tpu.pipeline_mode<synchronous>, transform_indices = @transform_3, window_bounds = array<i64: 1, 64>}, {transform_indices = @transform_4, window_bounds = array<i64: 1>}, {transform_indices = @transform_5, window_bounds = array<i64: 1, 1, 8>}]} {
    %c0 = arith.constant 0 : index
    %c0_0 = arith.constant 0 : index
    %0 = vector.load %arg1[%c0, %c0_0] : memref<8x32xf32, #tpu.memory_space<vmem>>, vector<8x32xf32>
    %c0_1 = arith.constant 0 : index
    %c0_2 = arith.constant 0 : index
    %1 = vector.load %arg2[%c0_1, %c0_2] : memref<32x64xf32, #tpu.memory_space<vmem>>, vector<32x64xf32>
    %cst = arith.constant dense<0.000000e+00> : vector<8x64xf32>
    %2 = tpu.matmul %0, %1, %cst {dimension_numbers = #tpu.dot_dimension_numbers<[1], [0], [0], [1], [0, 0, 1, 1], [], []>, precision = #tpu.contract_precision<fp32>} : vector<8x32xf32>, vector<32x64xf32>, vector<8x64xf32> -> vector<8x64xf32>
    %c0_3 = arith.constant 0 : index
    %c0_4 = arith.constant 0 : index
    %3 = vector.load %arg3[%c0_3, %c0_4] : memref<1x64xf32, #tpu.memory_space<vmem>>, vector<1x64xf32>
    %4 = vector.broadcast %3 : vector<1x64xf32> to vector<8x64xf32>
    %5 = arith.addf %2, %4 : vector<8x64xf32>
    %cst_5 = arith.constant 0.000000e+00 : f32
    %6 = vector.broadcast %cst_5 : f32 to vector<8x64xf32>
    %7 = arith.maximumf %5, %6 : vector<8x64xf32>
    %c0_6 = arith.constant 0 : index
    %c0_7 = arith.constant 0 : index
    %8 = vector.load %arg4[%c0_6, %c0_7] : memref<1x64xf32, #tpu.memory_space<vmem>>, vector<1x64xf32>
    %cst_8 = arith.constant dense<0.000000e+00> : vector<1x8xf32>
    %9 = tpu.matmul %8, %7, %cst_8 {dimension_numbers = #tpu.dot_dimension_numbers<[1], [1], [0], [0], [0, 0, 1, 0], [], []>, precision = #tpu.contract_precision<fp32>} : vector<1x64xf32>, vector<8x64xf32>, vector<1x8xf32> -> vector<1x8xf32>
    %c0_9 = arith.constant 0 : index
    %10 = memref.load %arg5[%c0_9] : memref<1xf32, #tpu.memory_space<smem>>
    %11 = vector.broadcast %10 : f32 to vector<1x8xf32>
    %12 = arith.addf %9, %11 : vector<1x8xf32>
    %13 = arith.negf %12 : vector<1x8xf32>
    %14 = math.exp %13 : vector<1x8xf32>
    %cst_10 = arith.constant 1.000000e+00 : f32
    %15 = vector.broadcast %cst_10 : f32 to vector<1x8xf32>
    %16 = arith.addf %15, %14 : vector<1x8xf32>
    %17 = arith.divf %15, %16 : vector<1x8xf32>
    %18 = vector.shape_cast %17 : vector<1x8xf32> to vector<1x1x8xf32>
    %c0_11 = arith.constant 0 : index
    %c0_12 = arith.constant 0 : index
    %c0_13 = arith.constant 0 : index
    %19 = vector.load %arg6[%c0_11, %c0_12, %c0_13] : memref<1x1x8xf32, #tpu.memory_space<vmem>>, vector<1x1x8xf32>
    tpu.vector_store %arg6[%c0_11, %c0_12, %c0_13], %18 {strides = array<i32>} : memref<1x1x8xf32, #tpu.memory_space<vmem>>, vector<1x1x8xf32>,
    return
  }
  func.func @transform_0(%arg0: i32) -> (i32, i32) {
    %c0_i32 = arith.constant 0 : i32
    %c0_i32_0 = arith.constant 0 : i32
    return %arg0, %c0_i32 : i32, i32
  }
  func.func @transform_1(%arg0: i32) -> (i32, i32) {
    %c0_i32 = arith.constant 0 : i32
    %c0_i32_0 = arith.constant 0 : i32
    %c0_i32_1 = arith.constant 0 : i32
    return %c0_i32, %c0_i32_0 : i32, i32
  }
  func.func @transform_2(%arg0: i32) -> (i32, i32) {
    %c0_i32 = arith.constant 0 : i32
    %c0_i32_0 = arith.constant 0 : i32
    %c0_i32_1 = arith.constant 0 : i32
    return %c0_i32, %c0_i32_0 : i32, i32
  }
  func.func @transform_3(%arg0: i32) -> (i32, i32) {
    %c0_i32 = arith.constant 0 : i32
    %c0_i32_0 = arith.constant 0 : i32
    %c0_i32_1 = arith.constant 0 : i32
    return %c0_i32, %c0_i32_0 : i32, i32
  }
  func.func @transform_4(%arg0: i32) -> i32 {
    %c0_i32 = arith.constant 0 : i32
    %c0_i32_0 = arith.constant 0 : i32
    return %c0_i32 : i32
  }
  func.func @transform_5(%arg0: i32) -> (i32, i32, i32) {
    %c0_i32 = arith.constant 0 : i32
    %c0_i32_0 = arith.constant 0 : i32
    %c0_i32_1 = arith.constant 0 : i32
    return %arg0, %c0_i32, %c0_i32_0 : i32, i32, i32
  }
}

</mosaic_0001>

<llo_original>
// kernel: simple_nn_forward.1
$region0: #{simple_nn_forward.1}
  #allocation0 [shape = 'u32[]', space=smem, size = 0x4, offset = 0x4, fixed_abs, tag = 'smem constant byte address 0x4 - core index']
  #allocation1 [shape = 'u32[72,128]{1,0:T(1,128)}', space=vmem, size = 0x9000, scoped, tag = 'internal scratch']
  #allocation2 [shape = 'f32[1]{0:T(128)S(6)}', space=smem, size = 0x200, scoped, tag = 'scoped memory for simple_nn_forward.1']
  %s0 = inlined_call_operand.hbm [shape: f32[8,32], index: 0, kind: input, shape index: {}]
  %s1 = inlined_call_operand.hbm [shape: f32[32,64], index: 1, kind: input, shape index: {}]
  %s2 = inlined_call_operand.vmem [shape: f32[1,64], index: 2, kind: input, shape index: {}]
  %s3 = inlined_call_operand.vmem [shape: f32[1,64], index: 3, kind: input, shape index: {}]
  %s4 = inlined_call_operand.<no memory space> [shape: f32[1], index: 4, kind: input, shape index: {}]
  %s5 = inlined_call_operand.hbm [shape: f32[1,1,8], index: 5, kind: output, shape index: {}]
  %s6 = sld [smem:[#allocation0]]
  $region38: #{simple_nn_forward.1} parent=0
    _
  %s8 = ssub.s32 1, %s6
  %s9 = scalar_select 0, %s8, %s6
  %10 = sst [smem:[#allocation2]] %s4
  $region1: #{simple_nn_forward.1} parent=0
    #allocation3 [shape = 'u8[4096]{0}', space=vmem, size = 0x1000, scoped, tag = 'input window, operand 0, single buffered']
    #allocation4 [shape = 's32[1]{0}', space=sflag, size = 0x4, scoped, tag = 'scoped memory for simple_nn_forward.1']
    #allocation5 [shape = 's32[1]{0}', space=sflag, size = 0x4, scoped, tag = 'scoped memory for simple_nn_forward.1']
    #allocation6 [shape = 'u8[16384]{0}', space=vmem, size = 0x4000, scoped, tag = 'input window, operand 1, single buffered']
    #allocation7 [shape = 's32[1]{0}', space=sflag, size = 0x4, scoped, tag = 'scoped memory for simple_nn_forward.1']
    #allocation8 [shape = 'u8[512]{0}', space=vmem, size = 0x400, scoped, tag = 'output window, operand 0, single buffered']
    %11 = vsyncpa [#allocation4], 0
    %12 = vsyncpa [#allocation7], 0
    %13 = vsyncpa [#allocation5], 0
    // Predicated region
    $region2: #{simple_nn_forward.1} parent=1 // pred_check
      _
    $region3: #{simple_nn_forward.1} parent=1 // pred_check_branch
      %15 = sbr.rel (0) target = $region5
    $region4: #{simple_nn_forward.1} parent=1 // pred_region
      %17 = vsyncadd [#allocation4], 0
      %s19 = sshll.u32 %s0, 4
      %s20 = int_to_ptr.hbm [resolvable:$true] %s19
      %s21 = sshll.u32 [#allocation3], 4
      %s22 = int_to_ptr.vmem [resolvable:$true] %s21
      %24 = dma.hbm_to_vmem [thread:$0]  %s20, 128, %s22, [#allocation4]
    $region5: #{simple_nn_forward.1} parent=1 // pred_fallthru
      _
    // Predicated region
    $region6: #{simple_nn_forward.1} parent=1 // pred_check
      _
    $region7: #{simple_nn_forward.1} parent=1 // pred_check_branch
      %26 = sbr.rel (0) target = $region9
    $region8: #{simple_nn_forward.1} parent=1 // pred_region
      %28 = vsyncadd [#allocation7], 0
      %s29 = sshll.u32 %s1, 4
      %s30 = int_to_ptr.hbm [resolvable:$true] %s29
      %s31 = sshll.u32 [#allocation6], 4
      %s32 = int_to_ptr.vmem [resolvable:$true] %s31
      %37 = dma.hbm_to_vmem [thread:$0]  %s30, 512, %s32, [#allocation7], 128, 128, 8
    $region9: #{simple_nn_forward.1} parent=1 // pred_fallthru
      _
    // Predicated region
    $region10: #{simple_nn_forward.1} parent=1 // pred_check
      _
    $region11: #{simple_nn_forward.1} parent=1 // pred_check_branch
      %39 = sbr.rel (0) target = $region13
    $region12: #{simple_nn_forward.1} parent=1 // pred_region
      _
    $region13: #{simple_nn_forward.1} parent=1 // pred_fallthru
      _
    // Predicated region
    $region14: #{simple_nn_forward.1} parent=1 // pred_check
      _
    $region15: #{simple_nn_forward.1} parent=1 // pred_check_branch
      %41 = sbr.rel (0) target = $region17
    $region16: #{simple_nn_forward.1} parent=1 // pred_region
      _
    $region17: #{simple_nn_forward.1} parent=1 // pred_fallthru
      _
    // Predicated region
    $region18: #{simple_nn_forward.1} parent=1 // pred_check
      _
    $region19: #{simple_nn_forward.1} parent=1 // pred_check_branch
      %43 = sbr.rel (0) target = $region21
    $region20: #{simple_nn_forward.1} parent=1 // pred_region
      _
    $region21: #{simple_nn_forward.1} parent=1 // pred_fallthru
      _
    // Predicated region
    $region22: #{simple_nn_forward.1} parent=1 // pred_check
      _
    $region23: #{simple_nn_forward.1} parent=1 // pred_check_branch
      %45 = sbr.rel (0) target = $region25
    $region24: #{simple_nn_forward.1} parent=1 // pred_region
      %47 = dma.done [#allocation4], 128
    $region25: #{simple_nn_forward.1} parent=1 // pred_fallthru
      _
    // Predicated region
    $region26: #{simple_nn_forward.1} parent=1 // pred_check
      _
    $region27: #{simple_nn_forward.1} parent=1 // pred_check_branch
      %49 = sbr.rel (0) target = $region29
    $region28: #{simple_nn_forward.1} parent=1 // pred_region
      %51 = dma.done [#allocation7], 512
    $region29: #{simple_nn_forward.1} parent=1 // pred_fallthru
      _
    %v52 = vld [vmem:[#allocation3] sm:$0xff]
    %v53 = vld [vmem:[#allocation6] sm:$0xff]
    %v54 = vld [vmem:[#allocation6 + $0x8] sm:$0xff]
    %v55 = vld [vmem:[#allocation6 + $0x10] sm:$0xff]
    %v56 = vld [vmem:[#allocation6 + $0x18] sm:$0xff]
    %v57 = vld [vmem:[%s2] sm:$0x1]
    %v59 = vperm.slane %v57, 0
    %vm61 = vcmask 261120
    %v63 = vsel %vm61, %v52, 0
    %65 = vmatpush.msra.mxu0 0.0
    %66 = vmatpush.msra.mxu0 0.0
    %67 = vmatpush.msra.mxu0 0.0
    %68 = vmatpush.msra.mxu0 0.0
    %69 = vmatpush.msra.mxu0 0.0
    %70 = vmatpush.msra.mxu0 0.0
    %71 = vmatpush.msra.mxu0 0.0
    %72 = vmatpush.msra.mxu0 0.0
    %73 = vmatpush.msra.mxu0 0.0
    %74 = vmatpush.msra.mxu0 0.0
    %75 = vmatpush.msra.mxu0 0.0
    %76 = vmatpush.msra.mxu0 0.0
    %v77 = vand.u32 %v56, 4294901760
    %78 = vmatpush.msra.mxu0 %v77
    %v79 = vand.u32 %v55, 4294901760
    %80 = vmatpush.msra.mxu0 %v79
    %v81 = vand.u32 %v54, 4294901760
    %82 = vmatpush.msra.mxu0 %v81
    %v83 = vand.u32 %v53, 4294901760
    %84 = vmatpush.msra.mxu0 %v83
    %v85 = vand.u32 %v63, 4294901760
    %v86 = vsub.f32 %v63, %v85
    %v87 = vand.u32 %v86, 4294901760
    %v88 = vsub.f32 %v86, %v87
    %v89 = vand.u32 %v88, 4294901760
    %90 = vmatmul.f32.gmra.mxu0 %v89
    %v91 = vpop.f32.mrf.mxu0
    %v92 = vadd.f32 %v59, %v91
    %93 = vdwg.mxu0
    %94 = vmatpush.msra.mxu0 0.0
    %95 = vmatpush.msra.mxu0 0.0
    %96 = vmatpush.msra.mxu0 0.0
    %97 = vmatpush.msra.mxu0 0.0
    %98 = vmatpush.msra.mxu0 0.0
    %99 = vmatpush.msra.mxu0 0.0
    %100 = vmatpush.msra.mxu0 0.0
    %101 = vmatpush.msra.mxu0 0.0
    %102 = vmatpush.msra.mxu0 0.0
    %103 = vmatpush.msra.mxu0 0.0
    %104 = vmatpush.msra.mxu0 0.0
    %105 = vmatpush.msra.mxu0 0.0
    %v106 = vand.u32 %v56, 4294901760
    %v107 = vsub.f32 %v56, %v106
    %v108 = vand.u32 %v107, 4294901760
    %v109 = vsub.f32 %v107, %v108
    %v110 = vand.u32 %v109, 4294901760
    %111 = vmatpush.msra.mxu0 %v110
    %v112 = vand.u32 %v55, 4294901760
    %v113 = vsub.f32 %v55, %v112
    %v114 = vand.u32 %v113, 4294901760
    %v115 = vsub.f32 %v113, %v114
    %v116 = vand.u32 %v115, 4294901760
    %117 = vmatpush.msra.mxu0 %v116
    %v118 = vand.u32 %v54, 4294901760
    %v119 = vsub.f32 %v54, %v118
    %v120 = vand.u32 %v119, 4294901760
    %v121 = vsub.f32 %v119, %v120
    %v122 = vand.u32 %v121, 4294901760
    %123 = vmatpush.msra.mxu0 %v122
    %v124 = vand.u32 %v53, 4294901760
    %v125 = vsub.f32 %v53, %v124
    %v126 = vand.u32 %v125, 4294901760
    %v127 = vsub.f32 %v125, %v126
    %v128 = vand.u32 %v127, 4294901760
    %129 = vmatpush.msra.mxu0 %v128
    %v130 = vand.u32 %v63, 4294901760
    %131 = vmatmul.f32.gmra.mxu0 %v130
    %v132 = vpop.f32.mrf.mxu0
    %v133 = vadd.f32 %v92, %v132
    %134 = vdwg.mxu0
    %135 = vmatpush.msra.mxu0 0.0
    %136 = vmatpush.msra.mxu0 0.0
    %137 = vmatpush.msra.mxu0 0.0
    %138 = vmatpush.msra.mxu0 0.0
    %139 = vmatpush.msra.mxu0 0.0
    %140 = vmatpush.msra.mxu0 0.0
    %141 = vmatpush.msra.mxu0 0.0
    %142 = vmatpush.msra.mxu0 0.0
    %143 = vmatpush.msra.mxu0 0.0
    %144 = vmatpush.msra.mxu0 0.0
    %145 = vmatpush.msra.mxu0 0.0
    %146 = vmatpush.msra.mxu0 0.0
    %v147 = vand.u32 %v56, 4294901760
    %v148 = vsub.f32 %v56, %v147
    %149 = vmatpush.msra.mxu0 %v148
    %v150 = vand.u32 %v55, 4294901760
    %v151 = vsub.f32 %v55, %v150
    %152 = vmatpush.msra.mxu0 %v151
    %v153 = vand.u32 %v54, 4294901760
    %v154 = vsub.f32 %v54, %v153
    %155 = vmatpush.msra.mxu0 %v154
    %v156 = vand.u32 %v53, 4294901760
    %v157 = vsub.f32 %v53, %v156
    %158 = vmatpush.msra.mxu0 %v157
    %v159 = vand.u32 %v63, 4294901760
    %v160 = vsub.f32 %v63, %v159
    %161 = vmatmul.f32.gmra.mxu0 %v160
    %v162 = vpop.f32.mrf.mxu0
    %v163 = vadd.f32 %v133, %v162
    %164 = vdwg.mxu0
    %165 = vmatpush.msra.mxu0 0.0
    %166 = vmatpush.msra.mxu0 0.0
    %167 = vmatpush.msra.mxu0 0.0
    %168 = vmatpush.msra.mxu0 0.0
    %169 = vmatpush.msra.mxu0 0.0
    %170 = vmatpush.msra.mxu0 0.0
    %171 = vmatpush.msra.mxu0 0.0
    %172 = vmatpush.msra.mxu0 0.0
    %173 = vmatpush.msra.mxu0 0.0
    %174 = vmatpush.msra.mxu0 0.0
    %175 = vmatpush.msra.mxu0 0.0
    %176 = vmatpush.msra.mxu0 0.0
    %v177 = vand.u32 %v56, 4294901760
    %178 = vmatpush.msra.mxu0 %v177
    %v179 = vand.u32 %v55, 4294901760
    %180 = vmatpush.msra.mxu0 %v179
    %v181 = vand.u32 %v54, 4294901760
    %182 = vmatpush.msra.mxu0 %v181
    %v183 = vand.u32 %v53, 4294901760
    %184 = vmatpush.msra.mxu0 %v183
    %v185 = vand.u32 %v63, 4294901760
    %v186 = vsub.f32 %v63, %v185
    %v187 = vand.u32 %v186, 4294901760
    %188 = vmatmul.f32.gmra.mxu0 %v187
    %v189 = vpop.f32.mrf.mxu0
    %v190 = vadd.f32 %v163, %v189
    %191 = vdwg.mxu0
    %192 = vmatpush.msra.mxu0 0.0
    %193 = vmatpush.msra.mxu0 0.0
    %194 = vmatpush.msra.mxu0 0.0
    %195 = vmatpush.msra.mxu0 0.0
    %196 = vmatpush.msra.mxu0 0.0
    %197 = vmatpush.msra.mxu0 0.0
    %198 = vmatpush.msra.mxu0 0.0
    %199 = vmatpush.msra.mxu0 0.0
    %200 = vmatpush.msra.mxu0 0.0
    %201 = vmatpush.msra.mxu0 0.0
    %202 = vmatpush.msra.mxu0 0.0
    %203 = vmatpush.msra.mxu0 0.0
    %v204 = vand.u32 %v56, 4294901760
    %v205 = vsub.f32 %v56, %v204
    %v206 = vand.u32 %v205, 4294901760
    %207 = vmatpush.msra.mxu0 %v206
    %v208 = vand.u32 %v55, 4294901760
    %v209 = vsub.f32 %v55, %v208
    %v210 = vand.u32 %v209, 4294901760
    %211 = vmatpush.msra.mxu0 %v210
    %v212 = vand.u32 %v54, 4294901760
    %v213 = vsub.f32 %v54, %v212
    %v214 = vand.u32 %v213, 4294901760
    %215 = vmatpush.msra.mxu0 %v214
    %v216 = vand.u32 %v53, 4294901760
    %v217 = vsub.f32 %v53, %v216
    %v218 = vand.u32 %v217, 4294901760
    %219 = vmatpush.msra.mxu0 %v218
    %v220 = vand.u32 %v63, 4294901760
    %221 = vmatmul.f32.gmra.mxu0 %v220
    %v222 = vpop.f32.mrf.mxu0
    %v223 = vadd.f32 %v190, %v222
    %224 = vdwg.mxu0
    %225 = vmatpush.msra.mxu0 0.0
    %226 = vmatpush.msra.mxu0 0.0
    %227 = vmatpush.msra.mxu0 0.0
    %228 = vmatpush.msra.mxu0 0.0
    %229 = vmatpush.msra.mxu0 0.0
    %230 = vmatpush.msra.mxu0 0.0
    %231 = vmatpush.msra.mxu0 0.0
    %232 = vmatpush.msra.mxu0 0.0
    %233 = vmatpush.msra.mxu0 0.0
    %234 = vmatpush.msra.mxu0 0.0
    %235 = vmatpush.msra.mxu0 0.0
    %236 = vmatpush.msra.mxu0 0.0
    %v237 = vand.u32 %v56, 4294901760
    %238 = vmatpush.msra.mxu0 %v237
    %v239 = vand.u32 %v55, 4294901760
    %240 = vmatpush.msra.mxu0 %v239
    %v241 = vand.u32 %v54, 4294901760
    %242 = vmatpush.msra.mxu0 %v241
    %v243 = vand.u32 %v53, 4294901760
    %244 = vmatpush.msra.mxu0 %v243
    %v245 = vand.u32 %v63, 4294901760
    %246 = vmatmul.f32.gmra.mxu0 %v245
    %v247 = vpop.f32.mrf.mxu0
    %v248 = vadd.f32 %v223, %v247
    %249 = vdwg.mxu0
    %v250 = vmax.f32 %v248, 0.0
    %v251 = vld [vmem:[%s3] sm:$0x1]
    %s252 = sld [smem:[#allocation2]]
    %v253 = vstv %s252
    %vm254 = vcmask 523264
    %v256 = vsel %vm254, %v251, 0
    %v259 = vsel %vm254, %v250, 0
    %261 = vmatpush.xpose.msra.mxu0 0.0
    %262 = vmatpush.xpose.msra.mxu0 0.0
    %263 = vmatpush.xpose.msra.mxu0 0.0
    %264 = vmatpush.xpose.msra.mxu0 0.0
    %265 = vmatpush.xpose.msra.mxu0 0.0
    %266 = vmatpush.xpose.msra.mxu0 0.0
    %267 = vmatpush.xpose.msra.mxu0 0.0
    %268 = vmatpush.xpose.msra.mxu0 0.0
    %269 = vmatpush.xpose.msra.mxu0 0.0
    %270 = vmatpush.xpose.msra.mxu0 0.0
    %271 = vmatpush.xpose.msra.mxu0 0.0
    %272 = vmatpush.xpose.msra.mxu0 0.0
    %273 = vmatpush.xpose.msra.mxu0 0.0
    %274 = vmatpush.xpose.msra.mxu0 0.0
    %275 = vmatpush.xpose.msra.mxu0 0.0
    %v276 = vand.u32 %v259, 4294901760
    %277 = vmatpush.xpose.msra.mxu0 %v276
    %v278 = vand.u32 %v256, 4294901760
    %v279 = vsub.f32 %v256, %v278
    %v280 = vand.u32 %v279, 4294901760
    %v281 = vsub.f32 %v279, %v280
    %v282 = vand.u32 %v281, 4294901760
    %283 = vmatmul.f32.gmra.mxu0 %v282
    %v284 = vpop.f32.mrf.mxu0
    %v285 = vadd.f32 %v253, %v284
    %286 = vdwg.mxu0
    %287 = vmatpush.xpose.msra.mxu0 0.0
    %288 = vmatpush.xpose.msra.mxu0 0.0
    %289 = vmatpush.xpose.msra.mxu0 0.0
    %290 = vmatpush.xpose.msra.mxu0 0.0
    %291 = vmatpush.xpose.msra.mxu0 0.0
    %292 = vmatpush.xpose.msra.mxu0 0.0
    %293 = vmatpush.xpose.msra.mxu0 0.0
    %294 = vmatpush.xpose.msra.mxu0 0.0
    %295 = vmatpush.xpose.msra.mxu0 0.0
    %296 = vmatpush.xpose.msra.mxu0 0.0
    %297 = vmatpush.xpose.msra.mxu0 0.0
    %298 = vmatpush.xpose.msra.mxu0 0.0
    %299 = vmatpush.xpose.msra.mxu0 0.0
    %300 = vmatpush.xpose.msra.mxu0 0.0
    %301 = vmatpush.xpose.msra.mxu0 0.0
    %v302 = vand.u32 %v259, 4294901760
    %v303 = vsub.f32 %v259, %v302
    %v304 = vand.u32 %v303, 4294901760
    %v305 = vsub.f32 %v303, %v304
    %v306 = vand.u32 %v305, 4294901760
    %307 = vmatpush.xpose.msra.mxu0 %v306
    %v308 = vand.u32 %v256, 4294901760
    %309 = vmatmul.f32.gmra.mxu0 %v308
    %v310 = vpop.f32.mrf.mxu0
    %v311 = vadd.f32 %v285, %v310
    %312 = vdwg.mxu0
    %313 = vmatpush.xpose.msra.mxu0 0.0
    %314 = vmatpush.xpose.msra.mxu0 0.0
    %315 = vmatpush.xpose.msra.mxu0 0.0
    %316 = vmatpush.xpose.msra.mxu0 0.0
    %317 = vmatpush.xpose.msra.mxu0 0.0
    %318 = vmatpush.xpose.msra.mxu0 0.0
    %319 = vmatpush.xpose.msra.mxu0 0.0
    %320 = vmatpush.xpose.msra.mxu0 0.0
    %321 = vmatpush.xpose.msra.mxu0 0.0
    %322 = vmatpush.xpose.msra.mxu0 0.0
    %323 = vmatpush.xpose.msra.mxu0 0.0
    %324 = vmatpush.xpose.msra.mxu0 0.0
    %325 = vmatpush.xpose.msra.mxu0 0.0
    %326 = vmatpush.xpose.msra.mxu0 0.0
    %327 = vmatpush.xpose.msra.mxu0 0.0
    %v328 = vand.u32 %v259, 4294901760
    %v329 = vsub.f32 %v259, %v328
    %330 = vmatpush.xpose.msra.mxu0 %v329
    %v331 = vand.u32 %v256, 4294901760
    %v332 = vsub.f32 %v256, %v331
    %333 = vmatmul.f32.gmra.mxu0 %v332
    %v334 = vpop.f32.mrf.mxu0
    %v335 = vadd.f32 %v311, %v334
    %336 = vdwg.mxu0
    %337 = vmatpush.xpose.msra.mxu0 0.0
    %338 = vmatpush.xpose.msra.mxu0 0.0
    %339 = vmatpush.xpose.msra.mxu0 0.0
    %340 = vmatpush.xpose.msra.mxu0 0.0
    %341 = vmatpush.xpose.msra.mxu0 0.0
    %342 = vmatpush.xpose.msra.mxu0 0.0
    %343 = vmatpush.xpose.msra.mxu0 0.0
    %344 = vmatpush.xpose.msra.mxu0 0.0
    %345 = vmatpush.xpose.msra.mxu0 0.0
    %346 = vmatpush.xpose.msra.mxu0 0.0
    %347 = vmatpush.xpose.msra.mxu0 0.0
    %348 = vmatpush.xpose.msra.mxu0 0.0
    %349 = vmatpush.xpose.msra.mxu0 0.0
    %350 = vmatpush.xpose.msra.mxu0 0.0
    %351 = vmatpush.xpose.msra.mxu0 0.0
    %v352 = vand.u32 %v259, 4294901760
    %353 = vmatpush.xpose.msra.mxu0 %v352
    %v354 = vand.u32 %v256, 4294901760
    %v355 = vsub.f32 %v256, %v354
    %v356 = vand.u32 %v355, 4294901760
    %357 = vmatmul.f32.gmra.mxu0 %v356
    %v358 = vpop.f32.mrf.mxu0
    %v359 = vadd.f32 %v335, %v358
    %360 = vdwg.mxu0
    %361 = vmatpush.xpose.msra.mxu0 0.0
    %362 = vmatpush.xpose.msra.mxu0 0.0
    %363 = vmatpush.xpose.msra.mxu0 0.0
    %364 = vmatpush.xpose.msra.mxu0 0.0
    %365 = vmatpush.xpose.msra.mxu0 0.0
    %366 = vmatpush.xpose.msra.mxu0 0.0
    %367 = vmatpush.xpose.msra.mxu0 0.0
    %368 = vmatpush.xpose.msra.mxu0 0.0
    %369 = vmatpush.xpose.msra.mxu0 0.0
    %370 = vmatpush.xpose.msra.mxu0 0.0
    %371 = vmatpush.xpose.msra.mxu0 0.0
    %372 = vmatpush.xpose.msra.mxu0 0.0
    %373 = vmatpush.xpose.msra.mxu0 0.0
    %374 = vmatpush.xpose.msra.mxu0 0.0
    %375 = vmatpush.xpose.msra.mxu0 0.0
    %v376 = vand.u32 %v259, 4294901760
    %v377 = vsub.f32 %v259, %v376
    %v378 = vand.u32 %v377, 4294901760
    %379 = vmatpush.xpose.msra.mxu0 %v378
    %v380 = vand.u32 %v256, 4294901760
    %381 = vmatmul.f32.gmra.mxu0 %v380
    %v382 = vpop.f32.mrf.mxu0
    %v383 = vadd.f32 %v359, %v382
    %384 = vdwg.mxu0
    %385 = vmatpush.xpose.msra.mxu0 0.0
    %386 = vmatpush.xpose.msra.mxu0 0.0
    %387 = vmatpush.xpose.msra.mxu0 0.0
    %388 = vmatpush.xpose.msra.mxu0 0.0
    %389 = vmatpush.xpose.msra.mxu0 0.0
    %390 = vmatpush.xpose.msra.mxu0 0.0
    %391 = vmatpush.xpose.msra.mxu0 0.0
    %392 = vmatpush.xpose.msra.mxu0 0.0
    %393 = vmatpush.xpose.msra.mxu0 0.0
    %394 = vmatpush.xpose.msra.mxu0 0.0
    %395 = vmatpush.xpose.msra.mxu0 0.0
    %396 = vmatpush.xpose.msra.mxu0 0.0
    %397 = vmatpush.xpose.msra.mxu0 0.0
    %398 = vmatpush.xpose.msra.mxu0 0.0
    %399 = vmatpush.xpose.msra.mxu0 0.0
    %v400 = vand.u32 %v259, 4294901760
    %401 = vmatpush.xpose.msra.mxu0 %v400
    %v402 = vand.u32 %v256, 4294901760
    %403 = vmatmul.f32.gmra.mxu0 %v402
    %v404 = vpop.f32.mrf.mxu0
    %v405 = vadd.f32 %v383, %v404
    %406 = vdwg.mxu0
    %v407 = vxor.u32 %v405, 2147483648
    %v408 = vmul.f32 %v407, 1.442695
    %v409 = vpow.pop %v408
    %v410 = vadd.f32 %v409, 1.0
    %v411 = vrcp.pop %v410
    %v412 = vmul.f32 %v410, %v411
    %v413 = vsub.f32 1.0, %v412
    %v414 = vmul.f32 %v411, %v413
    %v415 = vadd.f32 %v411, %v414
    %vm416 = vweird.f32 %v410
    %vm417 = vweird.f32 %v411
    %vm418 = vmor %vm416, %vm417
    %v419 = vsel %vm418, %v411, %v415
    %v420 = vand.u32 2147483647, %v410
    %vm421 = vcmp.eq.f32.partialorder %v420, 8.507059e+37
    %v422 = vand.u32 %v410, 2147483648
    %v423 = vor.u32 1.1754944e-38, %v422
    %v424 = vsel %vm421, %v423, %v419
    %v425 = vmul.f32 1.0, %v424
    %vm426 = vcmask 57344
    %427 = vst.msk [vmem:[#allocation8] sm:$0x1] %vm426, %v425
    // Predicated region
    $region30: #{simple_nn_forward.1} parent=1 // pred_check
      _
    $region31: #{simple_nn_forward.1} parent=1 // pred_check_branch
      %429 = sbr.rel (0) target = $region33
    $region32: #{simple_nn_forward.1} parent=1 // pred_region
      %431 = vsyncadd [#allocation5], 0
      %s433 = sshll.u32 [#allocation8], 4
      %s434 = int_to_ptr.vmem [resolvable:$true] %s433
      %s435 = sshll.u32 %s5, 4
      %s436 = int_to_ptr.hbm [resolvable:$true] %s435
      %438 = dma.vmem_to_hbm [thread:$0]  %s434, 16, %s436, [#allocation5]
    $region33: #{simple_nn_forward.1} parent=1 // pred_fallthru
      _
    // Predicated region
    $region34: #{simple_nn_forward.1} parent=1 // pred_check
      _
    $region35: #{simple_nn_forward.1} parent=1 // pred_check_branch
      %440 = sbr.rel (0) target = $region37
    $region36: #{simple_nn_forward.1} parent=1 // pred_region
      %442 = dma.done [#allocation5], 16
    $region37: #{simple_nn_forward.1} parent=1 // pred_fallthru
      _
    %443 = vsyncpa [#allocation4], 1
    %444 = vsyncpa [#allocation7], 1
    %445 = vsyncpa [#allocation5], 1

</llo_original>
